<compile_context>
chip_gen: v5e
topology: v5e:2x2
jax: 0.10.0
libtpu: 0.0.40
codegen_flags: <defaults>
</compile_context>

<pallas_src>
import functools
import math

import jax
import jax.numpy as jnp
from jax.experimental import pallas as pl
from jax.experimental.pallas import tpu as pltpu


# ---------------------------------------------------------------------------
# Kernel 1: row-tiled fused Q/K/V in-projection.
# ---------------------------------------------------------------------------
def qkv_proj_kernel(x_ref, pos_ref, wqk_ref, wv_ref, b_ref, qkv_ref):
    """x_ref/pos_ref: (TM, D) f32.  wqk_ref: (D, 2D) bf16 = [scale*Wq^T | Wk^T].
    wv_ref: (D, D) bf16 = Wv^T.  b_ref: (1, 3D) f32 = [scale*bq | bk | bv].
    qkv_ref out: (3, TM, D) bf16 = [q (pre-scaled) ; k ; v]."""
    x = x_ref[...].astype(jnp.float32)                      # value / residual input
    qk_in = (x + pos_ref[...].astype(jnp.float32)).astype(jnp.bfloat16)
    D = x.shape[-1]

    # bf16 MXU operands, f32 accumulation.
    qk = jnp.dot(qk_in, wqk_ref[...], preferred_element_type=jnp.float32)   # (TM, 2D)
    v = jnp.dot(x.astype(jnp.bfloat16), wv_ref[...],
                preferred_element_type=jnp.float32)                         # (TM, D)

    qkv_ref[0] = (qk[:, :D] + b_ref[:, :D]).astype(qkv_ref.dtype)
    qkv_ref[1] = (qk[:, D:] + b_ref[:, D:2 * D]).astype(qkv_ref.dtype)
    qkv_ref[2] = (v + b_ref[:, 2 * D:]).astype(qkv_ref.dtype)


# ---------------------------------------------------------------------------
# Kernel 2: Q-tiled attention + merged out-projection + residual + LayerNorm.
# Grid = (B, num_q_tiles), both axes "parallel".
# ---------------------------------------------------------------------------
def attn_out_ln_kernel(q_ref, k_ref, v_ref, x_ref, wo_ref, ob_ref, o_ref,
                       merged_ref, *, eps):
    """q_ref: (1, H, TQ, hd) bf16 (pre-scaled).  k/v_ref: (1, H, S, hd) bf16.
    x_ref: (1, TQ, D) residual.  wo_ref: (D, D) bf16 = Wo^T.
    ob_ref: (3, D) f32 = [bo ; gamma ; beta].  merged_ref: (TQ, D) f32 scratch.
    o_ref: (1, TQ, D)."""
    q = q_ref[0]                                             # (H, TQ, hd)
    k = k_ref[0]                                             # (H, S, hd)
    v = v_ref[0]                                             # (H, S, hd)
    H, TQ, hd = q.shape

    # scores + unnormalized softmax, batched over heads (one dot_general each)
    s = jnp.einsum("hqd,hkd->hqk", q, k,
                   preferred_element_type=jnp.float32)       # (H, TQ, S) f32
    s = s - jnp.max(s, axis=-1, keepdims=True)
    p = jnp.exp(s)
    l = jnp.sum(p, axis=-1, keepdims=True)                   # (H, TQ, 1)

    attn = jnp.einsum("hqk,hkd->hqd", p.astype(jnp.bfloat16), v,
                      preferred_element_type=jnp.float32)    # (H, TQ, hd) f32
    # deferred softmax normalization: (H, TQ, hd) multiply instead of (H, TQ, S)
    attn = attn * pl.reciprocal(l, approx=True)

    # merge heads into a lane-dense (TQ, D) buffer (single relayout through
    # VMEM), then ONE K=D out-projection MXU pass.
    for h in range(H):
        merged_ref[:, h * hd:(h + 1) * hd] = attn[h]
    out = jnp.dot(merged_ref[...].astype(jnp.bfloat16), wo_ref[...],
                  preferred_element_type=jnp.float32)        # (TQ, D) f32

    # residual (+ dropout as identity at inference) and LayerNorm, all in f32
    x = x_ref[0].astype(jnp.float32)                         # (TQ, D)
    y = x + out + ob_ref[0:1, :]
    mu = jnp.mean(y, axis=-1, keepdims=True)
    var = jnp.mean((y - mu) ** 2, axis=-1, keepdims=True)
    yn = (y - mu) * jax.lax.rsqrt(var + eps)
    o_ref[0] = (yn * ob_ref[1:2, :] + ob_ref[2:3, :]).astype(o_ref.dtype)


# ---------------------------------------------------------------------------
# Wrapper
# ---------------------------------------------------------------------------
@functools.partial(jax.jit, static_argnames=("num_heads",))
def mhsa_layer(query, query_pos, params, *, num_heads):
    """query, query_pos: (B, S, D). Returns (B, S, D)."""
    B, S, D = query.shape
    H = num_heads
    hd = D // H
    wq, wk, wv, bq, bk, bv, wo, bo, gamma, beta = params

    # host-side (XLA) parameter prep: fold softmax scale into Wq/bq,
    # pre-transpose, pack, cast MXU operands to bf16.
    scale = 1.0 / math.sqrt(hd)
    w_qk_t = jnp.concatenate([wq.T * scale, wk.T], axis=1).astype(jnp.bfloat16)  # (D, 2D)
    w_v_t = wv.T.astype(jnp.bfloat16)                                            # (D, D)
    b_in = jnp.concatenate([bq * scale, bk, bv], axis=1).astype(jnp.float32)     # (1, 3D)
    wo_t = wo.T.astype(jnp.bfloat16)                                             # (D, D)
    ob = jnp.concatenate([bo, gamma, beta], axis=0).astype(jnp.float32)          # (3, D)

    BS = B * S

    # ---- kernel 1: row-tiled fused QKV projection --------------------------
    TM = min(BS, 256)
    n_row_tiles = pl.cdiv(BS, TM)
    est1 = (2 * (2 * TM * D * 4                 # x + pos tiles (f32, dbl-buffered)
                 + D * 2 * D * 2 + D * D * 2    # weights (bf16)
                 + 3 * D * 4)                   # packed biases
            + 2 * 3 * TM * D * 2)               # qkv output tile (bf16)
    vmem1 = min(max(2 * est1, 32 << 20), 64 << 20)

    qkv = pl.pallas_call(
        qkv_proj_kernel,
        out_shape=jax.ShapeDtypeStruct((3, BS, D), jnp.bfloat16),
        grid=(n_row_tiles,),
        in_specs=[
            pl.BlockSpec((TM, D), lambda i: (i, 0)),          # query rows
            pl.BlockSpec((TM, D), lambda i: (i, 0)),          # query_pos rows
            pl.BlockSpec((D, 2 * D), lambda i: (0, 0)),       # [scale*Wq^T | Wk^T]
            pl.BlockSpec((D, D), lambda i: (0, 0)),           # Wv^T
            pl.BlockSpec((1, 3 * D), lambda i: (0, 0)),       # packed biases
        ],
        out_specs=pl.BlockSpec((3, TM, D), lambda i: (0, i, 0)),
        compiler_params=pltpu.CompilerParams(
            dimension_semantics=("parallel",), vmem_limit_bytes=vmem1),
    )(query.reshape(BS, D), query_pos.reshape(BS, D), w_qk_t, w_v_t, b_in)

    # XLA layout plumbing between kernels: split heads.
    # TODO(synk): on v7x, keep q/k/v lane-dense as (B, S, D) and split heads
    # inside kernel 2 to avoid the hd-minor lane padding + extra HBM round trip.
    def to_heads(a):                                          # (BS, D) -> (B, H, S, hd)
        return a.reshape(B, S, H, hd).transpose(0, 2, 1, 3)

    qh, kh, vh = to_heads(qkv[0]), to_heads(qkv[1]), to_heads(qkv[2])

    # ---- kernel 2: Q-tiled attention + out-proj + residual + LayerNorm -----
    TQ = min(S, 128)
    n_q_tiles = pl.cdiv(S, TQ)
    # TODO(synk): if S must be padded to a multiple of TQ and the padding also
    # flows into K/V, mask padded key positions to -inf before the exp.
    hd_pad = -(-hd // 128) * 128                 # lane padding of hd-minor bf16 blocks
    est2 = (2 * (H * TQ * hd_pad * 2             # q tile (dbl-buffered)
                 + 2 * H * S * hd_pad * 2        # k + v (full S)
                 + TQ * D * 4                    # residual tile
                 + D * D * 2 + 3 * D * 4)        # Wo^T + packed bo/gamma/beta
            + 2 * TQ * D * query.dtype.itemsize  # output tile
            + 2 * H * TQ * S * 4                 # scores + probs (f32)
            + TQ * D * 4)                        # head-merge scratch
    vmem2 = min(max(2 * est2, 32 << 20), 64 << 20)   # clamp to v7x physical budget

    return pl.pallas_call(
        functools.partial(attn_out_ln_kernel, eps=1e-5),
        out_shape=jax.ShapeDtypeStruct((B, S, D), query.dtype),
        grid=(B, n_q_tiles),
        in_specs=[
            pl.BlockSpec((1, H, TQ, hd), lambda b, t: (b, 0, t, 0)),  # q (Q-tiled)
            pl.BlockSpec((1, H, S, hd), lambda b, t: (b, 0, 0, 0)),   # k (full S)
            pl.BlockSpec((1, H, S, hd), lambda b, t: (b, 0, 0, 0)),   # v (full S)
            pl.BlockSpec((1, TQ, D), lambda b, t: (b, t, 0)),         # residual tile
            pl.BlockSpec((D, D), lambda b, t: (0, 0)),                # Wo^T
            pl.BlockSpec((3, D), lambda b, t: (0, 0)),                # [bo;gamma;beta]
        ],
        out_specs=pl.BlockSpec((1, TQ, D), lambda b, t: (b, t, 0)),
        scratch_shapes=[pltpu.VMEM((TQ, D), jnp.float32)],            # head merge
        compiler_params=pltpu.CompilerParams(
            dimension_semantics=("parallel", "parallel"),
            vmem_limit_bytes=vmem2),
    )(qh, kh, vh, query, wo_t, ob)


# ---------------------------------------------------------------------------
# Pure-JAX reference (PyTorch semantics, mirroring the bf16 MXU-operand /
# f32-accumulation policy so the comparison tolerance stays tight).
# ---------------------------------------------------------------------------
def reference_jax(query, query_pos, params, *, num_heads):
    wq, wk, wv, bq, bk, bv, wo, bo, gamma, beta = params
    B, S, D = query.shape
    H = num_heads
    hd = D // H
    f32, bf16 = jnp.float32, jnp.bfloat16
    scale = 1.0 / math.sqrt(hd)

    x = query.astype(f32).reshape(B * S, D)
    qk = x + query_pos.astype(f32).reshape(B * S, D)

    def mm(a, b):   # bf16 operands, f32 accumulation
        return jnp.dot(a.astype(bf16), b.astype(bf16), preferred_element_type=f32)

    q = ((mm(qk, wq.T) + bq) * scale).astype(bf16)
    k = (mm(qk, wk.T) + bk).astype(bf16)
    v = (mm(x, wv.T) + bv).astype(bf16)

    def split(a):   # (BS, D) -> (B, H, S, hd)
        return a.reshape(B, S, H, hd).transpose(0, 2, 1, 3)

    qh, kh, vh = split(q), split(k), split(v)
    s = jnp.einsum("bhqd,bhkd->bhqk", qh, kh, preferred_element_type=f32)
    p = jax.nn.softmax(s, axis=-1)
    o = jnp.einsum("bhqk,bhkd->bhqd", p.astype(bf16), vh, preferred_element_type=f32)
    o = o.transpose(0, 2, 1, 3).reshape(B * S, D)
    o = mm(o, wo.T) + bo

    y = x + o
    mu = y.mean(-1, keepdims=True)
    var = ((y - mu) ** 2).mean(-1, keepdims=True)
    out = ((y - mu) / jnp.sqrt(var + 1e-5)) * gamma + beta
    return out.reshape(B, S, D)


def make_params(key, d_model):
    ks = jax.random.split(key, 8)
    sc = 1.0 / jnp.sqrt(jnp.float32(d_model))
    wq = jax.random.normal(ks[0], (d_model, d_model), jnp.float32) * sc
    wk = jax.random.normal(ks[1], (d_model, d_model), jnp.float32) * sc
    wv = jax.random.normal(ks[2], (d_model, d_model), jnp.float32) * sc
    bq = jax.random.normal(ks[3], (1, d_model), jnp.float32) * 0.02
    bk = jax.random.normal(ks[4], (1, d_model), jnp.float32) * 0.02
    bv = jax.random.normal(ks[5], (1, d_model), jnp.float32) * 0.02
    wo = jax.random.normal(ks[6], (d_model, d_model), jnp.float32) * sc
    bo = jax.random.normal(ks[7], (1, d_model), jnp.float32) * 0.02
    gamma = jnp.ones((1, d_model), jnp.float32)
    beta = jnp.zeros((1, d_model), jnp.float32)
    return (wq, wk, wv, bq, bk, bv, wo, bo, gamma, beta)


if __name__ == "__main__":
    B, S, D, H = 2, 8, 32, 4   # small shapes consistent with d_model / num_heads
    key = jax.random.PRNGKey(0)
    kq, kp, kw = jax.random.split(key, 3)
    query = jax.random.normal(kq, (B, S, D), jnp.float32)
    query_pos = jax.random.normal(kp, (B, S, D), jnp.float32)
    params = make_params(kw, D)

    out = mhsa_layer(query, query_pos, params, num_heads=H)
    out = jax.block_until_ready(out)

    ref = reference_jax(query, query_pos, params, num_heads=H)
    assert out.shape == (B, S, D)
    assert jnp.allclose(out, ref, atol=2.5e-2, rtol=2.5e-2), float(jnp.max(jnp.abs(out - ref)))
    print("KERNEL_OK")
</pallas_src>

<mosaic_0001>
module attributes {stable_mosaic.version = 11 : i64} {
  func.func @qkv_proj_kernel(%arg0: i32, %arg1: memref<16x32xf32, #tpu.memory_space<vmem>>, %arg2: memref<16x32xf32, #tpu.memory_space<vmem>>, %arg3: memref<32x64xbf16, #tpu.memory_space<vmem>>, %arg4: memref<32x32xbf16, #tpu.memory_space<vmem>>, %arg5: memref<1x96xf32, #tpu.memory_space<vmem>>, %arg6: memref<3x16x32xbf16, #tpu.memory_space<vmem>>) attributes {dimension_semantics = [#tpu.dimension_semantics<parallel>], iteration_bounds = array<i64: 1>, scalar_prefetch = 0 : i64, scratch_operands = 0 : i64, tpu.core_type = #tpu.core_type<tc>, window_params = [{transform_indices = @transform_0, window_bounds = array<i64: 16, 32>}, {transform_indices = @transform_1, window_bounds = array<i64: 16, 32>}, {pipeline_mode = #tpu.pipeline_mode<synchronous>, transform_indices = @transform_2, window_bounds = array<i64: 32, 64>}, {pipeline_mode = #tpu.pipeline_mode<synchronous>, transform_indices = @transform_3, window_bounds = array<i64: 32, 32>}, {pipeline_mode = #tpu.pipeline_mode<synchronous>, transform_indices = @transform_4, window_bounds = array<i64: 1, 96>}, {transform_indices = @transform_5, window_bounds = array<i64: 3, 16, 32>}]} {
    %c0 = arith.constant 0 : index
    %c0_0 = arith.constant 0 : index
    %0 = vector.load %arg1[%c0, %c0_0] : memref<16x32xf32, #tpu.memory_space<vmem>>, vector<16x32xf32>
    %c0_1 = arith.constant 0 : index
    %c0_2 = arith.constant 0 : index
    %1 = vector.load %arg2[%c0_1, %c0_2] : memref<16x32xf32, #tpu.memory_space<vmem>>, vector<16x32xf32>
    %2 = arith.addf %0, %1 : vector<16x32xf32>
    %3 = arith.truncf %2 : vector<16x32xf32> to vector<16x32xbf16>
    %c0_3 = arith.constant 0 : index
    %c0_4 = arith.constant 0 : index
    %4 = vector.load %arg3[%c0_3, %c0_4] : memref<32x64xbf16, #tpu.memory_space<vmem>>, vector<32x64xbf16>
    %cst = arith.constant dense<0.000000e+00> : vector<16x64xf32>
    %5 = tpu.matmul %3, %4, %cst {dimension_numbers = #tpu.dot_dimension_numbers<[1], [0], [0], [1], [0, 0, 1, 1], [], []>} : vector<16x32xbf16>, vector<32x64xbf16>, vector<16x64xf32> -> vector<16x64xf32>
    %6 = arith.truncf %0 : vector<16x32xf32> to vector<16x32xbf16>
    %c0_5 = arith.constant 0 : index
    %c0_6 = arith.constant 0 : index
    %7 = vector.load %arg4[%c0_5, %c0_6] : memref<32x32xbf16, #tpu.memory_space<vmem>>, vector<32x32xbf16>
    %cst_7 = arith.constant dense<0.000000e+00> : vector<16x32xf32>
    %8 = tpu.matmul %6, %7, %cst_7 {dimension_numbers = #tpu.dot_dimension_numbers<[1], [0], [0], [1], [0, 0, 1, 1], [], []>} : vector<16x32xbf16>, vector<32x32xbf16>, vector<16x32xf32> -> vector<16x32xf32>
    %9 = vector.extract_strided_slice %5 {offsets = [0, 0], sizes = [16, 32], strides = [1, 1]} : vector<16x64xf32> to vector<16x32xf32>
    %c0_8 = arith.constant 0 : index
    %c0_9 = arith.constant 0 : index
    %10 = vector.load %arg5[%c0_8, %c0_9] : memref<1x96xf32, #tpu.memory_space<vmem>>, vector<1x32xf32>
    %11 = vector.broadcast %10 : vector<1x32xf32> to vector<16x32xf32>
    %12 = arith.addf %9, %11 : vector<16x32xf32>
    %13 = arith.truncf %12 : vector<16x32xf32> to vector<16x32xbf16>
    %c0_10 = arith.constant 0 : index
    %c0_11 = arith.constant 0 : index
    %c0_12 = arith.constant 0 : index
    %14 = vector.load %arg6[%c0_10, %c0_11, %c0_12] : memref<3x16x32xbf16, #tpu.memory_space<vmem>>, vector<1x16x32xbf16>
    %15 = vector.shape_cast %14 : vector<1x16x32xbf16> to vector<16x32xbf16>
    %16 = vector.shape_cast %13 : vector<16x32xbf16> to vector<1x16x32xbf16>
    tpu.vector_store %arg6[%c0_10, %c0_11, %c0_12], %16 {strides = array<i32>} : memref<3x16x32xbf16, #tpu.memory_space<vmem>>, vector<1x16x32xbf16>,
    %17 = vector.extract_strided_slice %5 {offsets = [0, 32], sizes = [16, 32], strides = [1, 1]} : vector<16x64xf32> to vector<16x32xf32>
    %c0_13 = arith.constant 0 : index
    %c32 = arith.constant 32 : index
    %18 = vector.load %arg5[%c0_13, %c32] : memref<1x96xf32, #tpu.memory_space<vmem>>, vector<1x32xf32>
    %19 = vector.broadcast %18 : vector<1x32xf32> to vector<16x32xf32>
    %20 = arith.addf %17, %19 : vector<16x32xf32>
    %21 = arith.truncf %20 : vector<16x32xf32> to vector<16x32xbf16>
    %c1 = arith.constant 1 : index
    %c0_14 = arith.constant 0 : index
    %c0_15 = arith.constant 0 : index
    %22 = vector.load %arg6[%c1, %c0_14, %c0_15] : memref<3x16x32xbf16, #tpu.memory_space<vmem>>, vector<1x16x32xbf16>
    %23 = vector.shape_cast %22 : vector<1x16x32xbf16> to vector<16x32xbf16>
    %24 = vector.shape_cast %21 : vector<16x32xbf16> to vector<1x16x32xbf16>
    tpu.vector_store %arg6[%c1, %c0_14, %c0_15], %24 {strides = array<i32>} : memref<3x16x32xbf16, #tpu.memory_space<vmem>>, vector<1x16x32xbf16>,
    %c0_16 = arith.constant 0 : index
    %c64 = arith.constant 64 : index
    %25 = vector.load %arg5[%c0_16, %c64] : memref<1x96xf32, #tpu.memory_space<vmem>>, vector<1x32xf32>
    %26 = vector.broadcast %25 : vector<1x32xf32> to vector<16x32xf32>
    %27 = arith.addf %8, %26 : vector<16x32xf32>
    %28 = arith.truncf %27 : vector<16x32xf32> to vector<16x32xbf16>
    %c2 = arith.constant 2 : index
    %c0_17 = arith.constant 0 : index
    %c0_18 = arith.constant 0 : index
    %29 = vector.load %arg6[%c2, %c0_17, %c0_18] : memref<3x16x32xbf16, #tpu.memory_space<vmem>>, vector<1x16x32xbf16>
    %30 = vector.shape_cast %29 : vector<1x16x32xbf16> to vector<16x32xbf16>
    %31 = vector.shape_cast %28 : vector<16x32xbf16> to vector<1x16x32xbf16>
    tpu.vector_store %arg6[%c2, %c0_17, %c0_18], %31 {strides = array<i32>} : memref<3x16x32xbf16, #tpu.memory_space<vmem>>, vector<1x16x32xbf16>,
    return
  }
  func.func @transform_0(%arg0: i32) -> (i32, i32) {
    %c0_i32 = arith.constant 0 : i32
    %c0_i32_0 = arith.constant 0 : i32
    return %arg0, %c0_i32 : i32, i32
  }
  func.func @transform_1(%arg0: i32) -> (i32, i32) {
    %c0_i32 = arith.constant 0 : i32
    %c0_i32_0 = arith.constant 0 : i32
    return %arg0, %c0_i32 : i32, i32
  }
  func.func @transform_2(%arg0: i32) -> (i32, i32) {
    %c0_i32 = arith.constant 0 : i32
    %c0_i32_0 = arith.constant 0 : i32
    %c0_i32_1 = arith.constant 0 : i32
    return %c0_i32, %c0_i32_0 : i32, i32
  }
  func.func @transform_3(%arg0: i32) -> (i32, i32) {
    %c0_i32 = arith.constant 0 : i32
    %c0_i32_0 = arith.constant 0 : i32
    %c0_i32_1 = arith.constant 0 : i32
    return %c0_i32, %c0_i32_0 : i32, i32
  }
  func.func @transform_4(%arg0: i32) -> (i32, i32) {
    %c0_i32 = arith.constant 0 : i32
    %c0_i32_0 = arith.constant 0 : i32
    %c0_i32_1 = arith.constant 0 : i32
    return %c0_i32, %c0_i32_0 : i32, i32
  }
  func.func @transform_5(%arg0: i32) -> (i32, i32, i32) {
    %c0_i32 = arith.constant 0 : i32
    %c0_i32_0 = arith.constant 0 : i32
    %c0_i32_1 = arith.constant 0 : i32
    return %c0_i32, %arg0, %c0_i32_0 : i32, i32, i32
  }
}

module attributes {stable_mosaic.version = 11 : i64} {
  func.func @attn_out_ln_kernel(%arg0: i32, %arg1: i32, %arg2: memref<1x4x8x8xbf16, #tpu.memory_space<vmem>>, %arg3: memref<1x4x8x8xbf16, #tpu.memory_space<vmem>>, %arg4: memref<1x4x8x8xbf16, #tpu.memory_space<vmem>>, %arg5: memref<1x8x32xf32, #tpu.memory_space<vmem>>, %arg6: memref<32x32xbf16, #tpu.memory_space<vmem>>, %arg7: memref<3x32xf32, #tpu.memory_space<vmem>>, %arg8: memref<1x8x32xf32, #tpu.memory_space<vmem>>, %arg9: memref<8x32xf32, #tpu.memory_space<vmem>>) attributes {dimension_semantics = [#tpu.dimension_semantics<parallel>, #tpu.dimension_semantics<parallel>], iteration_bounds = array<i64: 2, 1>, scalar_prefetch = 0 : i64, scratch_operands = 1 : i64, tpu.core_type = #tpu.core_type<tc>, window_params = [{transform_indices = @transform_0, window_bounds = array<i64: 1, 4, 8, 8>}, {transform_indices = @transform_1, window_bounds = array<i64: 1, 4, 8, 8>}, {transform_indices = @transform_2, window_bounds = array<i64: 1, 4, 8, 8>}, {transform_indices = @transform_3, window_bounds = array<i64: 1, 8, 32>}, {pipeline_mode = #tpu.pipeline_mode<synchronous>, transform_indices = @transform_4, window_bounds = array<i64: 32, 32>}, {pipeline_mode = #tpu.pipeline_mode<synchronous>, transform_indices = @transform_5, window_bounds = array<i64: 3, 32>}, {transform_indices = @transform_6, window_bounds = array<i64: 1, 8, 32>}]} {
    %c0 = arith.constant 0 : index
    %c0_0 = arith.constant 0 : index
    %c0_1 = arith.constant 0 : index
    %c0_2 = arith.constant 0 : index
    %0 = vector.load %arg2[%c0, %c0_0, %c0_1, %c0_2] : memref<1x4x8x8xbf16, #tpu.memory_space<vmem>>, vector<1x4x8x8xbf16>
    %1 = vector.shape_cast %0 : vector<1x4x8x8xbf16> to vector<4x8x8xbf16>
    %c0_3 = arith.constant 0 : index
    %c0_4 = arith.constant 0 : index
    %c0_5 = arith.constant 0 : index
    %c0_6 = arith.constant 0 : index
    %2 = vector.load %arg3[%c0_3, %c0_4, %c0_5, %c0_6] : memref<1x4x8x8xbf16, #tpu.memory_space<vmem>>, vector<1x4x8x8xbf16>
    %3 = vector.shape_cast %2 : vector<1x4x8x8xbf16> to vector<4x8x8xbf16>
    %c0_7 = arith.constant 0 : index
    %c0_8 = arith.constant 0 : index
    %c0_9 = arith.constant 0 : index
    %c0_10 = arith.constant 0 : index
    %4 = vector.load %arg4[%c0_7, %c0_8, %c0_9, %c0_10] : memref<1x4x8x8xbf16, #tpu.memory_space<vmem>>, vector<1x4x8x8xbf16>
    %5 = vector.shape_cast %4 : vector<1x4x8x8xbf16> to vector<4x8x8xbf16>
    "tpu.trace_start"() <{level = 10 : i32, message = "hqd,hkd->hqk"}> : () -> ()
    %cst = arith.constant dense<0.000000e+00> : vector<4x8x8xf32>
    %6 = tpu.matmul %1, %3, %cst {dimension_numbers = #tpu.dot_dimension_numbers<[2], [2], [1], [1], [0, 0, 0, 1, 1, 1], [0], [0]>} : vector<4x8x8xbf16>, vector<4x8x8xbf16>, vector<4x8x8xf32> -> vector<4x8x8xf32>
    "tpu.trace_stop"() : () -> ()
    %cst_11 = arith.constant dense<0xFF800000> : vector<4x8xf32>
    %7 = vector.multi_reduction <maximumf>, %6, %cst_11 [2] : vector<4x8x8xf32> to vector<4x8xf32>
    %8 = vector.shape_cast %7 : vector<4x8xf32> to vector<4x8x1xf32>
    %9 = vector.broadcast %8 : vector<4x8x1xf32> to vector<4x8x8xf32>
    %10 = arith.subf %6, %9 : vector<4x8x8xf32>
    %11 = math.exp %10 : vector<4x8x8xf32>
    %cst_12 = arith.constant dense<0.000000e+00> : vector<4x8xf32>
    %12 = vector.multi_reduction <add>, %11, %cst_12 [2] : vector<4x8x8xf32> to vector<4x8xf32>
    %13 = vector.shape_cast %12 : vector<4x8xf32> to vector<4x8x1xf32>
    %14 = arith.truncf %11 : vector<4x8x8xf32> to vector<4x8x8xbf16>
    "tpu.trace_start"() <{level = 10 : i32, message = "hqk,hkd->hqd"}> : () -> ()
    %cst_13 = arith.constant dense<0.000000e+00> : vector<4x8x8xf32>
    %15 = tpu.matmul %14, %5, %cst_13 {dimension_numbers = #tpu.dot_dimension_numbers<[2], [1], [1], [2], [0, 0, 0, 1, 1, 2], [0], [0]>} : vector<4x8x8xbf16>, vector<4x8x8xbf16>, vector<4x8x8xf32> -> vector<4x8x8xf32>
    "tpu.trace_stop"() : () -> ()
    %16 = tpu.reciprocal %13 {approx = true} : vector<4x8x1xf32> -> vector<4x8x1xf32>
    %17 = vector.broadcast %16 : vector<4x8x1xf32> to vector<4x8x8xf32>
    %18 = arith.mulf %15, %17 : vector<4x8x8xf32>
    %19 = vector.extract_strided_slice %18 {offsets = [0, 0, 0], sizes = [1, 8, 8], strides = [1, 1, 1]} : vector<4x8x8xf32> to vector<1x8x8xf32>
    %20 = vector.shape_cast %19 : vector<1x8x8xf32> to vector<8x8xf32>
    %c0_14 = arith.constant 0 : index
    %c0_15 = arith.constant 0 : index
    %21 = vector.load %arg9[%c0_14, %c0_15] : memref<8x32xf32, #tpu.memory_space<vmem>>, vector<8x8xf32>
    tpu.vector_store %arg9[%c0_14, %c0_15], %20 {strides = array<i32>} : memref<8x32xf32, #tpu.memory_space<vmem>>, vector<8x8xf32>,
    %22 = vector.extract_strided_slice %18 {offsets = [1, 0, 0], sizes = [1, 8, 8], strides = [1, 1, 1]} : vector<4x8x8xf32> to vector<1x8x8xf32>
    %23 = vector.shape_cast %22 : vector<1x8x8xf32> to vector<8x8xf32>
    %c0_16 = arith.constant 0 : index
    %c8 = arith.constant 8 : index
    %24 = vector.load %arg9[%c0_16, %c8] : memref<8x32xf32, #tpu.memory_space<vmem>>, vector<8x8xf32>
    tpu.vector_store %arg9[%c0_16, %c8], %23 {strides = array<i32>} : memref<8x32xf32, #tpu.memory_space<vmem>>, vector<8x8xf32>,
    %25 = vector.extract_strided_slice %18 {offsets = [2, 0, 0], sizes = [1, 8, 8], strides = [1, 1, 1]} : vector<4x8x8xf32> to vector<1x8x8xf32>
    %26 = vector.shape_cast %25 : vector<1x8x8xf32> to vector<8x8xf32>
    %c0_17 = arith.constant 0 : index
    %c16 = arith.constant 16 : index
    %27 = vector.load %arg9[%c0_17, %c16] : memref<8x32xf32, #tpu.memory_space<vmem>>, vector<8x8xf32>
    tpu.vector_store %arg9[%c0_17, %c16], %26 {strides = array<i32>} : memref<8x32xf32, #tpu.memory_space<vmem>>, vector<8x8xf32>,
    %28 = vector.extract_strided_slice %18 {offsets = [3, 0, 0], sizes = [1, 8, 8], strides = [1, 1, 1]} : vector<4x8x8xf32> to vector<1x8x8xf32>
    %29 = vector.shape_cast %28 : vector<1x8x8xf32> to vector<8x8xf32>
    %c0_18 = arith.constant 0 : index
    %c24 = arith.constant 24 : index
    %30 = vector.load %arg9[%c0_18, %c24] : memref<8x32xf32, #tpu.memory_space<vmem>>, vector<8x8xf32>
    tpu.vector_store %arg9[%c0_18, %c24], %29 {strides = array<i32>} : memref<8x32xf32, #tpu.memory_space<vmem>>, vector<8x8xf32>,
    %c0_19 = arith.constant 0 : index
    %c0_20 = arith.constant 0 : index
    %31 = vector.load %arg9[%c0_19, %c0_20] : memref<8x32xf32, #tpu.memory_space<vmem>>, vector<8x32xf32>
    %32 = arith.truncf %31 : vector<8x32xf32> to vector<8x32xbf16>
    %c0_21 = arith.constant 0 : index
    %c0_22 = arith.constant 0 : index
    %33 = vector.load %arg6[%c0_21, %c0_22] : memref<32x32xbf16, #tpu.memory_space<vmem>>, vector<32x32xbf16>
    %cst_23 = arith.constant dense<0.000000e+00> : vector<8x32xf32>
    %34 = tpu.matmul %32, %33, %cst_23 {dimension_numbers = #tpu.dot_dimension_numbers<[1], [0], [0], [1], [0, 0, 1, 1], [], []>} : vector<8x32xbf16>, vector<32x32xbf16>, vector<8x32xf32> -> vector<8x32xf32>
    %c0_24 = arith.constant 0 : index
    %c0_25 = arith.constant 0 : index
    %c0_26 = arith.constant 0 : index
    %35 = vector.load %arg5[%c0_24, %c0_25, %c0_26] : memref<1x8x32xf32, #tpu.memory_space<vmem>>, vector<1x8x32xf32>
    %36 = vector.shape_cast %35 : vector<1x8x32xf32> to vector<8x32xf32>
    %37 = arith.addf %36, %34 : vector<8x32xf32>
    %c0_27 = arith.constant 0 : index
    %c0_28 = arith.constant 0 : index
    %38 = vector.load %arg7[%c0_27, %c0_28] : memref<3x32xf32, #tpu.memory_space<vmem>>, vector<1x32xf32>
    %39 = vector.broadcast %38 : vector<1x32xf32> to vector<8x32xf32>
    %40 = arith.addf %37, %39 : vector<8x32xf32>
    %cst_29 = arith.constant dense<0.000000e+00> : vector<8xf32>
    %41 = vector.multi_reduction <add>, %40, %cst_29 [1] : vector<8x32xf32> to vector<8xf32>
    %42 = vector.shape_cast %41 : vector<8xf32> to vector<8x1xf32>
    %cst_30 = arith.constant 3.200000e+01 : f32
    %43 = vector.broadcast %cst_30 : f32 to vector<8x1xf32>
    %44 = arith.divf %42, %43 : vector<8x1xf32>
    %45 = vector.broadcast %44 : vector<8x1xf32> to vector<8x32xf32>
    %46 = arith.subf %40, %45 : vector<8x32xf32>
    %47 = arith.mulf %46, %46 : vector<8x32xf32>
    %cst_31 = arith.constant dense<0.000000e+00> : vector<8xf32>
    %48 = vector.multi_reduction <add>, %47, %cst_31 [1] : vector<8x32xf32> to vector<8xf32>
    %49 = vector.shape_cast %48 : vector<8xf32> to vector<8x1xf32>
    %cst_32 = arith.constant 3.200000e+01 : f32
    %50 = vector.broadcast %cst_32 : f32 to vector<8x1xf32>
    %51 = arith.divf %49, %50 : vector<8x1xf32>
    %52 = vector.broadcast %44 : vector<8x1xf32> to vector<8x32xf32>
    %53 = arith.subf %40, %52 : vector<8x32xf32>
    %cst_33 = arith.constant 9.99999974E-6 : f32
    %54 = vector.broadcast %cst_33 : f32 to vector<8x1xf32>
    %55 = arith.addf %51, %54 : vector<8x1xf32>
    %56 = math.rsqrt %55 : vector<8x1xf32>
    %57 = vector.broadcast %56 : vector<8x1xf32> to vector<8x32xf32>
    %58 = arith.mulf %53, %57 : vector<8x32xf32>
    %c1 = arith.constant 1 : index
    %c0_34 = arith.constant 0 : index
    %59 = vector.load %arg7[%c1, %c0_34] : memref<3x32xf32, #tpu.memory_space<vmem>>, vector<1x32xf32>
    %60 = vector.broadcast %59 : vector<1x32xf32> to vector<8x32xf32>
    %61 = arith.mulf %58, %60 : vector<8x32xf32>
    %c2 = arith.constant 2 : index
    %c0_35 = arith.constant 0 : index
    %62 = vector.load %arg7[%c2, %c0_35] : memref<3x32xf32, #tpu.memory_space<vmem>>, vector<1x32xf32>
    %63 = vector.broadcast %62 : vector<1x32xf32> to vector<8x32xf32>
    %64 = arith.addf %61, %63 : vector<8x32xf32>
    %c0_36 = arith.constant 0 : index
    %c0_37 = arith.constant 0 : index
    %c0_38 = arith.constant 0 : index
    %65 = vector.load %arg8[%c0_36, %c0_37, %c0_38] : memref<1x8x32xf32, #tpu.memory_space<vmem>>, vector<1x8x32xf32>
    %66 = vector.shape_cast %65 : vector<1x8x32xf32> to vector<8x32xf32>
    %67 = vector.shape_cast %64 : vector<8x32xf32> to vector<1x8x32xf32>
    tpu.vector_store %arg8[%c0_36, %c0_37, %c0_38], %67 {strides = array<i32>} : memref<1x8x32xf32, #tpu.memory_space<vmem>>, vector<1x8x32xf32>,
    return
  }
  func.func @transform_0(%arg0: i32, %arg1: i32) -> (i32, i32, i32, i32) {
    %c0_i32 = arith.constant 0 : i32
    %c0_i32_0 = arith.constant 0 : i32
    %c0_i32_1 = arith.constant 0 : i32
    return %arg0, %c0_i32, %arg1, %c0_i32_0 : i32, i32, i32, i32
  }
  func.func @transform_1(%arg0: i32, %arg1: i32) -> (i32, i32, i32, i32) {
    %c0_i32 = arith.constant 0 : i32
    %c0_i32_0 = arith.constant 0 : i32
    %c0_i32_1 = arith.constant 0 : i32
    %c0_i32_2 = arith.constant 0 : i32
    return %arg0, %c0_i32, %c0_i32_0, %c0_i32_1 : i32, i32, i32, i32
  }
  func.func @transform_2(%arg0: i32, %arg1: i32) -> (i32, i32, i32, i32) {
    %c0_i32 = arith.constant 0 : i32
    %c0_i32_0 = arith.constant 0 : i32
    %c0_i32_1 = arith.constant 0 : i32
    %c0_i32_2 = arith.constant 0 : i32
    return %arg0, %c0_i32, %c0_i32_0, %c0_i32_1 : i32, i32, i32, i32
  }
  func.func @transform_3(%arg0: i32, %arg1: i32) -> (i32, i32, i32) {
    %c0_i32 = arith.constant 0 : i32
    %c0_i32_0 = arith.constant 0 : i32
    return %arg0, %arg1, %c0_i32 : i32, i32, i32
  }
  func.func @transform_4(%arg0: i32, %arg1: i32) -> (i32, i32) {
    %c0_i32 = arith.constant 0 : i32
    %c0_i32_0 = arith.constant 0 : i32
    %c0_i32_1 = arith.constant 0 : i32
    return %c0_i32, %c0_i32_0 : i32, i32
  }
  func.func @transform_5(%arg0: i32, %arg1: i32) -> (i32, i32) {
    %c0_i32 = arith.constant 0 : i32
    %c0_i32_0 = arith.constant 0 : i32
    %c0_i32_1 = arith.constant 0 : i32
    return %c0_i32, %c0_i32_0 : i32, i32
  }
  func.func @transform_6(%arg0: i32, %arg1: i32) -> (i32, i32, i32) {
    %c0_i32 = arith.constant 0 : i32
    %c0_i32_0 = arith.constant 0 : i32
    return %arg0, %arg1, %c0_i32 : i32, i32, i32
  }
}

</mosaic_0001>

<llo_original>
// kernel: squeeze.5
$region0: #{squeeze.5}
  %s0 = inlined_call_operand.vmem [shape: bf16[1,16,32], index: 0, kind: input, shape index: {}]
  %s1 = inlined_call_operand.vmem [shape: bf16[2,8,4,8], index: 1, kind: output, shape index: {}]
  $region1: #{squeeze.5} parent=0
    #allocation0 [shape = 'u8[65536]{0}', space=vmem, size = 0x10000, scoped, tag = 'scoped mem for output reshape']
    #allocation1 [shape = 'u8[8192]{0}', space=vmem, size = 0x2000, scoped, tag = 'scoped mem for input reshape']
    %s3 = ssub.s32 256, 1
    %s4 = scalar_lea.vmem %s0, 4
    %s5 = sshrl.u32 %s3, 1
    %s6 = sor.u32 %s3, %s5
    %s7 = sand.u32 %s6, 85
    %s8 = sshrl.u32 %s7, 1
    %s9 = sor.u32 %s7, %s8
    %s10 = sand.u32 51, %s9
    %s11 = sshrl.u32 %s10, 2
    %s12 = sor.u32 %s10, %s11
    %s13 = sand.u32 15, %s12
    %v14 = vld [vmem:[%s4] sm:%s13]
    %v15 = vunpack.c.l.bf16 %v14
    %v16 = vunpack.c.h.bf16 %v14
    %s17 = scalar_lea.vmem [#allocation1], 8
    %18 = vst [vmem:[%s17] sm:%s3] %v15
    %s19 = sshrl.u32 %s3, 1
    %s20 = sor.u32 %s3, %s19
    %s21 = sand.u32 %s20, 85
    %s22 = sshrl.u32 %s21, 1
    %s23 = sor.u32 %s21, %s22
    %s24 = sand.u32 51, %s23
    %s25 = sshrl.u32 %s24, 2
    %s26 = sor.u32 %s24, %s25
    %s27 = sand.u32 15, %s26
    %v28 = vld [vmem:[%s0] sm:%s27]
    %v29 = vunpack.c.l.bf16 %v28
    %v30 = vunpack.c.h.bf16 %v28
    %31 = vst [vmem:[#allocation1] sm:%s3] %v29
    %v32 = vld [vmem:[#allocation1] sm:$0xff]
    %vm33 = vcmask 64512
    %34 = vst.msk [vmem:[#allocation0] ss:$8 sm:$0xf] %vm33, %v32
    %35 = vst.msk [vmem:[#allocation0] ss:$8 sm:$0xf0] %vm33, %v32
    %s36 = scalar_lea.vmem [#allocation1], 8
    %v37 = vld [vmem:[%s36] sm:$0xff]
    %vm38 = vcmask 64512
    %s39 = scalar_lea.vmem [#allocation0], 64
    %40 = vst.msk [vmem:[%s39] ss:$8 sm:$0xf] %vm38, %v37
    %s41 = scalar_lea.vmem [#allocation0], 64
    %42 = vst.msk [vmem:[%s41] ss:$8 sm:$0xf0] %vm38, %v37
    %v43 = vld [vmem:[#allocation1] sm:$0xff]
    %44 = vrot.lane.b32.xlu0 %v43, 120
    %v45 = vpop.permute.xlu0 %44
    %vm46 = vcmask 64512
    %s47 = scalar_lea.vmem [#allocation0], 1
    %48 = vst.msk [vmem:[%s47] ss:$8 sm:$0xf] %vm46, %v45
    %s49 = scalar_lea.vmem [#allocation0], 1
    %50 = vst.msk [vmem:[%s49] ss:$8 sm:$0xf0] %vm46, %v45
    %s51 = scalar_lea.vmem [#allocation1], 8
    %v52 = vld [vmem:[%s51] sm:$0xff]
    %53 = vrot.lane.b32.xlu0 %v52, 120
    %v54 = vpop.permute.xlu0 %53
    %vm55 = vcmask 64512
    %s56 = scalar_lea.vmem [#allocation0], 65
    %57 = vst.msk [vmem:[%s56] ss:$8 sm:$0xf] %vm55, %v54
    %s58 = scalar_lea.vmem [#allocation0], 65
    %59 = vst.msk [vmem:[%s58] ss:$8 sm:$0xf0] %vm55, %v54
    %v60 = vld [vmem:[#allocation1] sm:$0xff]
    %61 = vrot.lane.b32.xlu0 %v60, 112
    %v62 = vpop.permute.xlu0 %61
    %vm63 = vcmask 64512
    %s64 = scalar_lea.vmem [#allocation0], 2
    %65 = vst.msk [vmem:[%s64] ss:$8 sm:$0xf] %vm63, %v62
    %s66 = scalar_lea.vmem [#allocation0], 2
    %67 = vst.msk [vmem:[%s66] ss:$8 sm:$0xf0] %vm63, %v62
    %s68 = scalar_lea.vmem [#allocation1], 8
    %v69 = vld [vmem:[%s68] sm:$0xff]
    %70 = vrot.lane.b32.xlu0 %v69, 112
    %v71 = vpop.permute.xlu0 %70
    %vm72 = vcmask 64512
    %s73 = scalar_lea.vmem [#allocation0], 66
    %74 = vst.msk [vmem:[%s73] ss:$8 sm:$0xf] %vm72, %v71
    %s75 = scalar_lea.vmem [#allocation0], 66
    %76 = vst.msk [vmem:[%s75] ss:$8 sm:$0xf0] %vm72, %v71
    %v77 = vld [vmem:[#allocation1] sm:$0xff]
    %78 = vrot.lane.b32.xlu0 %v77, 104
    %v79 = vpop.permute.xlu0 %78
    %vm80 = vcmask 64512
    %s81 = scalar_lea.vmem [#allocation0], 3
    %82 = vst.msk [vmem:[%s81] ss:$8 sm:$0xf] %vm80, %v79
    %s83 = scalar_lea.vmem [#allocation0], 3
    %84 = vst.msk [vmem:[%s83] ss:$8 sm:$0xf0] %vm80, %v79
    %s85 = scalar_lea.vmem [#allocation1], 8
    %v86 = vld [vmem:[%s85] sm:$0xff]
    %87 = vrot.lane.b32.xlu0 %v86, 104
    %v88 = vpop.permute.xlu0 %87
    %vm89 = vcmask 64512
    %s90 = scalar_lea.vmem [#allocation0], 67
    %91 = vst.msk [vmem:[%s90] ss:$8 sm:$0xf] %vm89, %v88
    %s92 = scalar_lea.vmem [#allocation0], 67
    %93 = vst.msk [vmem:[%s92] ss:$8 sm:$0xf0] %vm89, %v88
    %s95 = ssub.s32 16, 1
    %v96 = vld [vmem:[#allocation0] sm:%s95]
    %v97 = vpack.c.bf16 0.0, %v96
    %s99 = ssub.s32 4, 1
    %100 = vst [vmem:[%s1] sm:%s99] %v97
    %s101 = scalar_lea.vmem [#allocation0], 8
    %v102 = vld [vmem:[%s101] sm:%s95]
    %v103 = vpack.c.bf16 0.0, %v102
    %s105 = ssub.s32 4, 1
    %s106 = scalar_lea.vmem %s1, 2
    %107 = vst [vmem:[%s106] sm:%s105] %v103
    %s108 = scalar_lea.vmem [#allocation0], 16
    %v109 = vld [vmem:[%s108] sm:%s95]
    %v110 = vpack.c.bf16 0.0, %v109
    %s112 = ssub.s32 4, 1
    %s113 = scalar_lea.vmem %s1, 4
    %114 = vst [vmem:[%s113] sm:%s112] %v110
    %s115 = scalar_lea.vmem [#allocation0], 24
    %v116 = vld [vmem:[%s115] sm:%s95]
    %v117 = vpack.c.bf16 0.0, %v116
    %s119 = ssub.s32 4, 1
    %s120 = scalar_lea.vmem %s1, 6
    %121 = vst [vmem:[%s120] sm:%s119] %v117
    %s122 = scalar_lea.vmem [#allocation0], 32
    %v123 = vld [vmem:[%s122] sm:%s95]
    %v124 = vpack.c.bf16 0.0, %v123
    %s126 = ssub.s32 4, 1
    %s127 = scalar_lea.vmem %s1, 8
    %128 = vst [vmem:[%s127] sm:%s126] %v124
    %s129 = scalar_lea.vmem [#allocation0], 40
    %v130 = vld [vmem:[%s129] sm:%s95]
    %v131 = vpack.c.bf16 0.0, %v130
    %s133 = ssub.s32 4, 1
    %s134 = scalar_lea.vmem %s1, 10
    %135 = vst [vmem:[%s134] sm:%s133] %v131
    %s136 = scalar_lea.vmem [#allocation0], 48
    %v137 = vld [vmem:[%s136] sm:%s95]
    %v138 = vpack.c.bf16 0.0, %v137
    %s140 = ssub.s32 4, 1
    %s141 = scalar_lea.vmem %s1, 12
    %142 = vst [vmem:[%s141] sm:%s140] %v138
    %s143 = scalar_lea.vmem [#allocation0], 56
    %v144 = vld [vmem:[%s143] sm:%s95]
    %v145 = vpack.c.bf16 0.0, %v144
    %s147 = ssub.s32 4, 1
    %s148 = scalar_lea.vmem %s1, 14
    %149 = vst [vmem:[%s148] sm:%s147] %v145
    %s150 = scalar_lea.vmem [#allocation0], 64
    %v151 = vld [vmem:[%s150] sm:%s95]
    %v152 = vpack.c.bf16 0.0, %v151
    %s154 = ssub.s32 4, 1
    %s155 = scalar_lea.vmem %s1, 16
    %156 = vst [vmem:[%s155] sm:%s154] %v152
    %s157 = scalar_lea.vmem [#allocation0], 72
    %v158 = vld [vmem:[%s157] sm:%s95]
    %v159 = vpack.c.bf16 0.0, %v158
    %s161 = ssub.s32 4, 1
    %s162 = scalar_lea.vmem %s1, 18
    %163 = vst [vmem:[%s162] sm:%s161] %v159
    %s164 = scalar_lea.vmem [#allocation0], 80
    %v165 = vld [vmem:[%s164] sm:%s95]
    %v166 = vpack.c.bf16 0.0, %v165
    %s168 = ssub.s32 4, 1
    %s169 = scalar_lea.vmem %s1, 20
    %170 = vst [vmem:[%s169] sm:%s168] %v166
    %s171 = scalar_lea.vmem [#allocation0], 88
    %v172 = vld [vmem:[%s171] sm:%s95]
    %v173 = vpack.c.bf16 0.0, %v172
    %s175 = ssub.s32 4, 1
    %s176 = scalar_lea.vmem %s1, 22
    %177 = vst [vmem:[%s176] sm:%s175] %v173
    %s178 = scalar_lea.vmem [#allocation0], 96
    %v179 = vld [vmem:[%s178] sm:%s95]
    %v180 = vpack.c.bf16 0.0, %v179
    %s182 = ssub.s32 4, 1
    %s183 = scalar_lea.vmem %s1, 24
    %184 = vst [vmem:[%s183] sm:%s182] %v180
    %s185 = scalar_lea.vmem [#allocation0], 104
    %v186 = vld [vmem:[%s185] sm:%s95]
    %v187 = vpack.c.bf16 0.0, %v186
    %s189 = ssub.s32 4, 1
    %s190 = scalar_lea.vmem %s1, 26
    %191 = vst [vmem:[%s190] sm:%s189] %v187
    %s192 = scalar_lea.vmem [#allocation0], 112
    %v193 = vld [vmem:[%s192] sm:%s95]
    %v194 = vpack.c.bf16 0.0, %v193
    %s196 = ssub.s32 4, 1
    %s197 = scalar_lea.vmem %s1, 28
    %198 = vst [vmem:[%s197] sm:%s196] %v194
    %s199 = scalar_lea.vmem [#allocation0], 120
    %v200 = vld [vmem:[%s199] sm:%s95]
    %v201 = vpack.c.bf16 0.0, %v200
    %s203 = ssub.s32 4, 1
    %s204 = scalar_lea.vmem %s1, 30
    %205 = vst [vmem:[%s204] sm:%s203] %v201

// kernel: mhsa_layer.2
$region0: #{mhsa_layer.2}
  #allocation0 [shape = 'u32[]', space=smem, size = 0x4, offset = 0x4, fixed_abs, tag = 'smem constant byte address 0x4 - core index']
  #allocation1 [shape = 'u32[72,128]{1,0:T(1,128)}', space=vmem, size = 0x9000, scoped, tag = 'internal scratch']
  %s0 = inlined_call_operand.vmem [shape: f32[16,32], index: 0, kind: input, shape index: {}]
  %s1 = inlined_call_operand.vmem [shape: f32[16,32], index: 1, kind: input, shape index: {}]
  %s2 = inlined_call_operand.vmem [shape: bf16[32,64], index: 2, kind: input, shape index: {}]
  %s3 = inlined_call_operand.vmem [shape: bf16[32,32], index: 3, kind: input, shape index: {}]
  %s4 = inlined_call_operand.vmem [shape: f32[1,96], index: 4, kind: input, shape index: {}]
  %s5 = inlined_call_operand.vmem [shape: bf16[3,16,32], index: 5, kind: output, shape index: {}]
  %s6 = sld [smem:[#allocation0]]
  $region30: #{mhsa_layer.2} parent=0
    _
  %s8 = ssub.s32 1, %s6
  %s9 = scalar_select 0, %s8, %s6
  // Predicated region
  $region2: #{mhsa_layer.2} parent=0 // pred_check
    _
  $region3: #{mhsa_layer.2} parent=0 // pred_check_branch
    %11 = sbr.rel (0) target = $region5
  $region4: #{mhsa_layer.2} parent=0 // pred_region
    _
  $region5: #{mhsa_layer.2} parent=0 // pred_fallthru
    _
  // Predicated region
  $region6: #{mhsa_layer.2} parent=0 // pred_check
    _
  $region7: #{mhsa_layer.2} parent=0 // pred_check_branch
    %13 = sbr.rel (0) target = $region9
  $region8: #{mhsa_layer.2} parent=0 // pred_region
    _
  $region9: #{mhsa_layer.2} parent=0 // pred_fallthru
    _
  // Predicated region
  $region10: #{mhsa_layer.2} parent=0 // pred_check
    _
  $region11: #{mhsa_layer.2} parent=0 // pred_check_branch
    %15 = sbr.rel (0) target = $region13
  $region12: #{mhsa_layer.2} parent=0 // pred_region
    _
  $region13: #{mhsa_layer.2} parent=0 // pred_fallthru
    _
  // Predicated region
  $region14: #{mhsa_layer.2} parent=0 // pred_check
    _
  $region15: #{mhsa_layer.2} parent=0 // pred_check_branch
    %17 = sbr.rel (0) target = $region17
  $region16: #{mhsa_layer.2} parent=0 // pred_region
    _
  $region17: #{mhsa_layer.2} parent=0 // pred_fallthru
    _
  // Predicated region
  $region18: #{mhsa_layer.2} parent=0 // pred_check
    _
  $region19: #{mhsa_layer.2} parent=0 // pred_check_branch
    %19 = sbr.rel (0) target = $region21
  $region20: #{mhsa_layer.2} parent=0 // pred_region
    _
  $region21: #{mhsa_layer.2} parent=0 // pred_fallthru
    _
  %v21 = vld [vmem:[%s0] sm:$0xff]
  %v22 = vld [vmem:[%s0 + $0x8] sm:$0xff]
  %v23 = vld [vmem:[%s1] sm:$0xff]
  %v24 = vld [vmem:[%s1 + $0x8] sm:$0xff]
  %v25 = vadd.f32 %v21, %v23
  %v26 = vadd.f32 %v22, %v24
  %v27 = vpack.c.bf16 %v26, %v25
  %v28 = vld [vmem:[%s2] sm:$0xf]
  %v29 = vld [vmem:[%s2 + $0x4] sm:$0xf]
  %v30 = vld [vmem:[%s2 + $0x8] sm:$0xf]
  %v31 = vld [vmem:[%s2 + $0xc] sm:$0xf]
  %v36 = vunpack.c.l.b16 %v28
  %v37 = vunpack.c.l.b16 %v29
  %v38 = vunpack.c.l.b16 %v30
  %v39 = vunpack.c.l.b16 %v31
  %v40 = vpack.c.b16 %v37, %v36
  %v41 = vpack.c.b16 %v39, %v38
  %vm44 = vcmask 261120
  %v46 = vsel %vm44, %v27, 0
  %48 = vmatpush.bf16.msra.mxu0 0
  %49 = vmatpush.bf16.msra.mxu0 0
  %50 = vmatpush.bf16.msra.mxu0 0
  %51 = vmatpush.bf16.msra.mxu0 0
  %52 = vmatpush.bf16.msra.mxu0 0
  %53 = vmatpush.bf16.msra.mxu0 0
  %54 = vmatpush.bf16.msra.mxu0 %v41
  %55 = vmatpush.bf16.msra.mxu0 %v40
  %56 = vmatmul.bf16.gmra.mxu0 %v46
  %v57 = vpop.f32.mrf.mxu0
  %v58 = vadd.f32 0.0, %v57
  %v59 = vpop.f32.mrf.mxu0
  %v60 = vadd.f32 0.0, %v59
  %61 = vdwg.mxu0
  %v62 = vpack.c.bf16 %v22, %v21
  %v63 = vld [vmem:[%s3] sm:$0xf]
  %v64 = vld [vmem:[%s3 + $0x4] sm:$0xf]
  %v65 = vld [vmem:[%s3 + $0x8] sm:$0xf]
  %v66 = vld [vmem:[%s3 + $0xc] sm:$0xf]
  %v67 = vld [vmem:[%s4] sm:$0x1]
  %v69 = vperm.slane %v67, 0
  %v71 = vadd.f32 %v58, %v69
  %v72 = vadd.f32 %v60, %v69
  %v73 = vpack.c.bf16 %v71, %v71
  %v74 = vpack.c.bf16 %v72, %v72
  %vm75 = vcmask 257024
  %76 = vst.msk [vmem:[%s5] sm:$0xf] %vm75, %v73
  %77 = vst.msk [vmem:[%s5 + $0x4] sm:$0xf] %vm75, %v74
  %v78 = vld [vmem:[%s4] sm:$0x1]
  %v80 = vperm.slane %v78, 0
  %v82 = vadd.f32 %v58, %v80
  %v83 = vadd.f32 %v60, %v80
  %v84 = vpack.c.bf16 %v82, %v82
  %v85 = vpack.c.bf16 %v83, %v83
  %88 = vrot.lane.b32.xlu0 %v84, 96
  %v89 = vpop.permute.xlu0 %88
  %90 = vrot.lane.b32.xlu0 %v85, 96
  %v91 = vpop.permute.xlu0 %90
  %s94 = scalar_lea.vmem %s5, 8
  %95 = vst.msk [vmem:[%s94] sm:$0xf] %vm75, %v89
  %96 = vst.msk [vmem:[%s94 + $0x4] sm:$0xf] %vm75, %v91
  %v97 = vld [vmem:[%s4] sm:$0x1]
  %v99 = vperm.slane %v97, 0
  %v104 = vunpack.c.l.b16 %v63
  %v105 = vunpack.c.l.b16 %v64
  %v106 = vunpack.c.l.b16 %v65
  %v107 = vunpack.c.l.b16 %v66
  %v108 = vpack.c.b16 %v105, %v104
  %v109 = vpack.c.b16 %v107, %v106
  %112 = vrot.lane.b32.xlu0 %v99, 64
  %v113 = vpop.permute.xlu0 %112
  %v116 = vsel %vm44, %v62, 0
  %118 = vmatpush.bf16.msra.mxu0 0
  %119 = vmatpush.bf16.msra.mxu0 0
  %120 = vmatpush.bf16.msra.mxu0 0
  %121 = vmatpush.bf16.msra.mxu0 0
  %122 = vmatpush.bf16.msra.mxu0 0
  %123 = vmatpush.bf16.msra.mxu0 0
  %124 = vmatpush.bf16.msra.mxu0 %v109
  %125 = vmatpush.bf16.msra.mxu0 %v108
  %126 = vmatmul.bf16.gmra.mxu0 %v116
  %v127 = vpop.f32.mrf.mxu0
  %v128 = vadd.f32 %v113, %v127
  %v129 = vpop.f32.mrf.mxu0
  %v130 = vadd.f32 %v113, %v129
  %131 = vdwg.mxu0
  %v132 = vpack.c.bf16 %v128, %v128
  %v133 = vpack.c.bf16 %v130, %v130
  %s134 = scalar_lea.vmem %s5, 16
  %135 = vst.msk [vmem:[%s134] sm:$0xf] %vm75, %v132
  %136 = vst.msk [vmem:[%s134 + $0x4] sm:$0xf] %vm75, %v133
  // Predicated region
  $region22: #{mhsa_layer.2} parent=0 // pred_check
    _
  $region23: #{mhsa_layer.2} parent=0 // pred_check_branch
    %138 = sbr.rel (0) target = $region25
  $region24: #{mhsa_layer.2} parent=0 // pred_region
    _
  $region25: #{mhsa_layer.2} parent=0 // pred_fallthru
    _
  // Predicated region
  $region26: #{mhsa_layer.2} parent=0 // pred_check
    _
  $region27: #{mhsa_layer.2} parent=0 // pred_check_branch
    %140 = sbr.rel (0) target = $region29
  $region28: #{mhsa_layer.2} parent=0 // pred_region
    _
  $region29: #{mhsa_layer.2} parent=0 // pred_fallthru
    _

// kernel: mhsa_layer.3
$region0: #{mhsa_layer.3}
  #allocation0 [shape = 'u32[]', space=smem, size = 0x4, offset = 0x4, fixed_abs, tag = 'smem constant byte address 0x4 - core index']
  #allocation1 [shape = 'u32[72,128]{1,0:T(1,128)}', space=vmem, size = 0x9000, scoped, tag = 'internal scratch']
  #allocation2 [shape = 'f32[8,32]{1,0:T(8,128)}', space=vmem, size = 0x1000, scoped, tag = 'scratch operand']
  %s0 = inlined_call_operand.vmem [shape: bf16[2,4,8,8], index: 0, kind: input, shape index: {}]
  %s1 = inlined_call_operand.vmem [shape: bf16[2,4,8,8], index: 1, kind: input, shape index: {}]
  %s2 = inlined_call_operand.vmem [shape: bf16[2,4,8,8], index: 2, kind: input, shape index: {}]
  %s3 = inlined_call_operand.vmem [shape: f32[2,8,32], index: 3, kind: input, shape index: {}]
  %s4 = inlined_call_operand.vmem [shape: bf16[32,32], index: 4, kind: input, shape index: {}]
  %s5 = inlined_call_operand.vmem [shape: f32[3,32], index: 5, kind: input, shape index: {}]
  %s6 = inlined_call_operand.hbm [shape: f32[2,8,32], index: 6, kind: output, shape index: {}]
  %s7 = sld [smem:[#allocation0]]
  $region57: #{mhsa_layer.3} parent=0
    _
  %s9 = ssub.s32 1, %s7
  %s10 = scalar_select 0, %s9, %s7
  $region1: #{mhsa_layer.3} parent=0
    #allocation3 [shape = 'u8[8192]{0}', space=vmem, size = 0x2000, scoped, tag = 'output window, operand 0']
    #allocation4 [shape = 's32[2]{0}', space=sflag, size = 0x8, scoped, tag = 'scoped memory for mhsa_layer.3']
    %11 = vsyncpa [#allocation4], 0
    %s12 = scalar_lea.sflag [#allocation4], 1
    %13 = vsyncpa %s12, 0
    loop: start=0, step=1, limit=4
    $region2: #{mhsa_layer.3} parent=1 // loop_pre_header
      _
    $region3: #{mhsa_layer.3} parent=1 // loop_header
      %s15 = sphi 0, %s19
      %p16 = scmp.ge.s32.totalorder %s15, 4
      %s22 = sphi 0, %s34
      %s23 = sphi 0, %s30
      %s24 = sphi 0, %s22
      %s25 = sphi 0, %s23
      %s26 = sphi 0, %s24
      %s27 = sphi 0, %s25
      %s39 = sphi 0, %s41
      %s42 = sphi 0, %s39
      %s43 = sphi 0, %s42
      %s59 = sphi 0, %s43
      %s65 = sphi 0, %s67
      %s68 = sphi 0, %s65
      %s69 = sphi 0, %s68
      %s85 = sphi 0, %s69
      %s91 = sphi 0, %s93
      %s94 = sphi 0, %s91
      %s95 = sphi 0, %s94
      %s111 = sphi 0, %s95
      %s119 = sphi 0, %s121
      %s122 = sphi 0, %s119
      %s123 = sphi 0, %s122
      %s139 = sphi 0, %s123
      %s143 = sphi 0, %s143
      %s145 = sphi 0, %s143
      %s146 = sphi 0, %s145
      %s160 = sphi 0, %s146
      %s164 = sphi 0, %s164
      %s166 = sphi 0, %s164
      %s167 = sphi 0, %s166
      %s181 = sphi 0, %s167
      %s189 = sphi 0, %s191
      %s192 = sphi 0, %s189
      %s193 = sphi 0, %s192
      %s209 = sphi 0, %s193
    $region4: #{mhsa_layer.3} parent=1 // loop_header_branch
      %18 = sbr.rel (%p16) target = $region8
    $region5: #{mhsa_layer.3} parent=1 // loop_body
      %s20 = ssub.s32 %s15, 1
      %s21 = ssub.s32 %s15, 2
      %s28 = sadd.s32 1, %s23
      %p29 = scmp.ge.s32.totalorder %s28, 1
      %s30 = scalar_select %p29, 0, %s28
      %s31 = sadd.s32 1, %s22
      %s32 = scalar_select %p29, %s31, %s22
      %p33 = scmp.ge.s32.totalorder %s32, 2
      %s34 = scalar_select %p33, 0, %s32
      %s35 = ssub.s32 %s22, %s34
      %s36 = ssub.s32 %s23, %s30
      %s37 = sor.u32 %s35, %s36
      %p38 = scmp.eq.s32.totalorder %s37, 0
      %s40 = sadd.s32 %s39, 1
      %s41 = scalar_select %p38, %s39, %s40
      %p44 = pneg %p38
      %p45 = scmp.eq.s32.totalorder %s15, 1
      %p46 = por %p44, %p45
      %p47 = scmp.ne.s32.totalorder %s39, %s42
      %p48 = scmp.eq.s32.totalorder %s15, 0
      %p49 = por %p47, %p48
      %p50 = scmp.ne.s32.totalorder %s39, %s42
      %p51 = scmp.eq.s32.totalorder %s20, 1
      %p52 = por %p50, %p51
      %p53 = scmp.ne.s32.totalorder %s42, %s43
      %p54 = scmp.eq.s32.totalorder %s20, 0
      %p55 = por %p53, %p54
      %p56 = scmp.ne.s32.totalorder %s42, %s43
      %p57 = scmp.eq.s32.totalorder %s21, 1
      %p58 = por %p56, %p57
      %p60 = scmp.ne.s32.totalorder %s43, %s59
      %p61 = scmp.eq.s32.totalorder %s21, 0
      %p62 = por %p60, %p61
      %s63 = ssub.s32 %s22, %s34
      %p64 = scmp.eq.s32.totalorder %s63, 0
      %s66 = sadd.s32 %s65, 1
      %s67 = scalar_select %p64, %s65, %s66
      %p70 = pneg %p64
      %p71 = scmp.eq.s32.totalorder %s15, 1
      %p72 = por %p70, %p71
      %p73 = scmp.ne.s32.totalorder %s65, %s68
      %p74 = scmp.eq.s32.totalorder %s15, 0
      %p75 = por %p73, %p74
      %p76 = scmp.ne.s32.totalorder %s65, %s68
      %p77 = scmp.eq.s32.totalorder %s20, 1
      %p78 = por %p76, %p77
      %p79 = scmp.ne.s32.totalorder %s68, %s69
      %p80 = scmp.eq.s32.totalorder %s20, 0
      %p81 = por %p79, %p80
      %p82 = scmp.ne.s32.totalorder %s68, %s69
      %p83 = scmp.eq.s32.totalorder %s21, 1
      %p84 = por %p82, %p83
      %p86 = scmp.ne.s32.totalorder %s69, %s85
      %p87 = scmp.eq.s32.totalorder %s21, 0
      %p88 = por %p86, %p87
      %s89 = ssub.s32 %s22, %s34
      %p90 = scmp.eq.s32.totalorder %s89, 0
      %s92 = sadd.s32 %s91, 1
      %s93 = scalar_select %p90, %s91, %s92
      %p96 = pneg %p90
      %p97 = scmp.eq.s32.totalorder %s15, 1
      %p98 = por %p96, %p97
      %p99 = scmp.ne.s32.totalorder %s91, %s94
      %p100 = scmp.eq.s32.totalorder %s15, 0
      %p101 = por %p99, %p100
      %p102 = scmp.ne.s32.totalorder %s91, %s94
      %p103 = scmp.eq.s32.totalorder %s20, 1
      %p104 = por %p102, %p103
      %p105 = scmp.ne.s32.totalorder %s94, %s95
      %p106 = scmp.eq.s32.totalorder %s20, 0
      %p107 = por %p105, %p106
      %p108 = scmp.ne.s32.totalorder %s94, %s95
      %p109 = scmp.eq.s32.totalorder %s21, 1
      %p110 = por %p108, %p109
      %p112 = scmp.ne.s32.totalorder %s95, %s111
      %p113 = scmp.eq.s32.totalorder %s21, 0
      %p114 = por %p112, %p113
      %s115 = ssub.s32 %s22, %s34
      %s116 = ssub.s32 %s23, %s30
      %s117 = sor.u32 %s115, %s116
      %p118 = scmp.eq.s32.totalorder %s117, 0
      %s120 = sadd.s32 %s119, 1
      %s121 = scalar_select %p118, %s119, %s120
      %p124 = pneg %p118
      %p125 = scmp.eq.s32.totalorder %s15, 1
      %p126 = por %p124, %p125
      %p127 = scmp.ne.s32.totalorder %s119, %s122
      %p128 = scmp.eq.s32.totalorder %s15, 0
      %p129 = por %p127, %p128
      %p130 = scmp.ne.s32.totalorder %s119, %s122
      %p131 = scmp.eq.s32.totalorder %s20, 1
      %p132 = por %p130, %p131
      %p133 = scmp.ne.s32.totalorder %s122, %s123
      %p134 = scmp.eq.s32.totalorder %s20, 0
      %p135 = por %p133, %p134
      %p136 = scmp.ne.s32.totalorder %s122, %s123
      %p137 = scmp.eq.s32.totalorder %s21, 1
      %p138 = por %p136, %p137
      %p140 = scmp.ne.s32.totalorder %s123, %s139
      %p141 = scmp.eq.s32.totalorder %s21, 0
      %p142 = por %p140, %p141
      %s144 = sadd.s32 %s143, 1
      %p147 = scmp.eq.s32.totalorder %s15, 1
      %p148 = scmp.ne.s32.totalorder %s143, %s145
      %p149 = scmp.eq.s32.totalorder %s15, 0
      %p150 = por %p148, %p149
      %p151 = scmp.ne.s32.totalorder %s143, %s145
      %p152 = scmp.eq.s32.totalorder %s20, 1
      %p153 = por %p151, %p152
      %p154 = scmp.ne.s32.totalorder %s145, %s146
      %p155 = scmp.eq.s32.totalorder %s20, 0
      %p156 = por %p154, %p155
      %p157 = scmp.ne.s32.totalorder %s145, %s146
      %p158 = scmp.eq.s32.totalorder %s21, 1
      %p159 = por %p157, %p158
      %p161 = scmp.ne.s32.totalorder %s146, %s160
      %p162 = scmp.eq.s32.totalorder %s21, 0
      %p163 = por %p161, %p162
      %s165 = sadd.s32 %s164, 1
      %p168 = scmp.eq.s32.totalorder %s15, 1
      %p169 = scmp.ne.s32.totalorder %s164, %s166
      %p170 = scmp.eq.s32.totalorder %s15, 0
      %p171 = por %p169, %p170
      %p172 = scmp.ne.s32.totalorder %s164, %s166
      %p173 = scmp.eq.s32.totalorder %s20, 1
      %p174 = por %p172, %p173
      %p175 = scmp.ne.s32.totalorder %s166, %s167
      %p176 = scmp.eq.s32.totalorder %s20, 0
      %p177 = por %p175, %p176
      %p178 = scmp.ne.s32.totalorder %s166, %s167
      %p179 = scmp.eq.s32.totalorder %s21, 1
      %p180 = por %p178, %p179
      %p182 = scmp.ne.s32.totalorder %s167, %s181
      %p183 = scmp.eq.s32.totalorder %s21, 0
      %p184 = por %p182, %p183
      %s185 = ssub.s32 %s22, %s34
      %s186 = ssub.s32 %s23, %s30
      %s187 = sor.u32 %s185, %s186
      %p188 = scmp.eq.s32.totalorder %s187, 0
      %s190 = sadd.s32 %s189, 1
      %s191 = scalar_select %p188, %s189, %s190
      %p194 = pneg %p188
      %p195 = scmp.eq.s32.totalorder %s15, 1
      %p196 = por %p194, %p195
      %p197 = scmp.ne.s32.totalorder %s189, %s192
      %p198 = scmp.eq.s32.totalorder %s15, 0
      %p199 = por %p197, %p198
      %p200 = scmp.ne.s32.totalorder %s189, %s192
      %p201 = scmp.eq.s32.totalorder %s20, 1
      %p202 = por %p200, %p201
      %p203 = scmp.ne.s32.totalorder %s192, %s193
      %p204 = scmp.eq.s32.totalorder %s20, 0
      %p205 = por %p203, %p204
      %p206 = scmp.ne.s32.totalorder %s192, %s193
      %p207 = scmp.eq.s32.totalorder %s21, 1
      %p208 = por %p206, %p207
      %p210 = scmp.ne.s32.totalorder %s193, %s209
      %p211 = scmp.eq.s32.totalorder %s21, 0
      %p212 = por %p210, %p211
      %p213 = scmp.le.s32.totalorder 1, %s15
      %p214 = scmp.lt.s32.totalorder %s15, 3
      %p215 = pnand %p213, %p214
      %p216 = pneg %p215
      // Predicated region
      $region9: #{mhsa_layer.3} parent=5 // pred_check
        _
      $region10: #{mhsa_layer.3} parent=5 // pred_check_branch
        %218 = sbr.rel (%p215) target = $region12
      $region11: #{mhsa_layer.3} parent=5 // pred_region
        %s219 = ssub.s32 %s15, 1
        // Predicated region
        $region13: #{mhsa_layer.3} parent=11 // pred_check
          %p220 = pneg %p156
        $region14: #{mhsa_layer.3} parent=11 // pred_check_branch
          %222 = sbr.rel (%p220) target = $region16
        $region15: #{mhsa_layer.3} parent=11 // pred_region
          _
        $region16: #{mhsa_layer.3} parent=11 // pred_fallthru
          _
        // Predicated region
        $region17: #{mhsa_layer.3} parent=11 // pred_check
          %p223 = pneg %p177
        $region18: #{mhsa_layer.3} parent=11 // pred_check_branch
          %225 = sbr.rel (%p223) target = $region20
        $region19: #{mhsa_layer.3} parent=11 // pred_region
          _
        $region20: #{mhsa_layer.3} parent=11 // pred_fallthru
          _
      $region12: #{mhsa_layer.3} parent=5 // pred_fallthru
        _
      %p226 = scmp.lt.s32.totalorder %s15, 2
      // Predicated region
      $region21: #{mhsa_layer.3} parent=5 // pred_check
        %p227 = pneg %p226
      $region22: #{mhsa_layer.3} parent=5 // pred_check_branch
        %229 = sbr.rel (%p227) target = $region24
      $region23: #{mhsa_layer.3} parent=5 // pred_region
        // Predicated region
        $region25: #{mhsa_layer.3} parent=23 // pred_check
          %p230 = pneg %p49
        $region26: #{mhsa_layer.3} parent=23 // pred_check_branch
          %232 = sbr.rel (%p230) target = $region28
        $region27: #{mhsa_layer.3} parent=23 // pred_region
          %p233 = scmp.lt.s32.totalorder %s22, 1
          %s234 = scalar_select %p233, %s22, 1
          %p235 = scmp.lt.s32.totalorder %s23, 0
          %s236 = scalar_select %p235, %s23, 0
          %s237 = smul.addr %s234, 4
          %s238 = sadd.s32 %s236, %s237
          %s239 = smul.addr %s238, 4
          %s240 = scalar_lea.vmem %s0, %s239
        $region28: #{mhsa_layer.3} parent=23 // pred_fallthru
          _
        // Predicated region
        $region29: #{mhsa_layer.3} parent=23 // pred_check
          %p241 = pneg %p75
        $region30: #{mhsa_layer.3} parent=23 // pred_check_branch
          %243 = sbr.rel (%p241) target = $region32
        $region31: #{mhsa_layer.3} parent=23 // pred_region
          %p244 = scmp.lt.s32.totalorder %s22, 1
          %s245 = scalar_select %p244, %s22, 1
          %s246 = smul.addr %s245, 4
          %s247 = smul.addr %s246, 4
          %s248 = scalar_lea.vmem %s1, %s247
        $region32: #{mhsa_layer.3} parent=23 // pred_fallthru
          _
        // Predicated region
        $region33: #{mhsa_layer.3} parent=23 // pred_check
          %p249 = pneg %p101
        $region34: #{mhsa_layer.3} parent=23 // pred_check_branch
          %251 = sbr.rel (%p249) target = $region36
        $region35: #{mhsa_layer.3} parent=23 // pred_region
          %p252 = scmp.lt.s32.totalorder %s22, 1
          %s253 = scalar_select %p252, %s22, 1
          %s254 = smul.addr %s253, 4
          %s255 = smul.addr %s254, 4
          %s256 = scalar_lea.vmem %s2, %s255
        $region36: #{mhsa_layer.3} parent=23 // pred_fallthru
          _
        // Predicated region
        $region37: #{mhsa_layer.3} parent=23 // pred_check
          %p257 = pneg %p129
        $region38: #{mhsa_layer.3} parent=23 // pred_check_branch
          %259 = sbr.rel (%p257) target = $region40
        $region39: #{mhsa_layer.3} parent=23 // pred_region
          %p260 = scmp.lt.s32.totalorder %s22, 1
          %s261 = scalar_select %p260, %s22, 1
          %p262 = scmp.lt.s32.totalorder %s23, 0
          %s263 = scalar_select %p262, %s23, 0
          %s264 = sadd.s32 %s263, %s261
          %s265 = smul.addr %s264, 8
          %s266 = scalar_lea.vmem %s3, %s265
        $region40: #{mhsa_layer.3} parent=23 // pred_fallthru
          _
      $region24: #{mhsa_layer.3} parent=5 // pred_fallthru
        _
      %p267 = scmp.le.s32.totalorder 1, %s15
      %p268 = scmp.lt.s32.totalorder %s15, 3
      %p269 = pnand %p267, %p268
      %p270 = pneg %p269
      // Predicated region
      $region41: #{mhsa_layer.3} parent=5 // pred_check
        _
      $region42: #{mhsa_layer.3} parent=5 // pred_check_branch
        %272 = sbr.rel (%p269) target = $region44
      $region43: #{mhsa_layer.3} parent=5 // pred_region
        %s273 = ssub.s32 %s15, 1
        %p274 = scmp.lt.s32.totalorder %s24, 1
        %s275 = scalar_select %p274, %s24, 1
        %p276 = scmp.lt.s32.totalorder %s25, 0
        %s277 = scalar_select %p276, %s25, 0
        %s278 = smul.addr %s275, 4
        %s279 = sadd.s32 %s277, %s278
        %s280 = smul.addr %s279, 4
        %s281 = scalar_lea.vmem %s0, %s280
        %p282 = pneg %p55
        %p283 = pneg %p52
        %p284 = scmp.lt.s32.totalorder %s24, 1
        %s285 = scalar_select %p284, %s24, 1
        %s286 = smul.addr %s285, 4
        %s287 = smul.addr %s286, 4
        %s288 = scalar_lea.vmem %s1, %s287
        %p289 = pneg %p81
        %p290 = pneg %p78
        %p291 = scmp.lt.s32.totalorder %s24, 1
        %s292 = scalar_select %p291, %s24, 1
        %s293 = smul.addr %s292, 4
        %s294 = smul.addr %s293, 4
        %s295 = scalar_lea.vmem %s2, %s294
        %p296 = pneg %p107
        %p297 = pneg %p104
        %p298 = scmp.lt.s32.totalorder %s24, 1
        %s299 = scalar_select %p298, %s24, 1
        %p300 = scmp.lt.s32.totalorder %s25, 0
        %s301 = scalar_select %p300, %s25, 0
        %s302 = sadd.s32 %s301, %s299
        %s303 = smul.addr %s302, 8
        %s304 = scalar_lea.vmem %s3, %s303
        %p305 = pneg %p135
        %p306 = pneg %p132
        %p307 = pneg %p156
        %p308 = pneg %p153
        %p309 = pneg %p177
        %p310 = pneg %p174
        %p311 = pneg %p205
        %p312 = pneg %p202
        %s313 = sand.u32 %s192, 1
        %s314 = scalar_lea.sflag [#allocation4], %s313
        %s315 = sand.u32 %s192, 1
        %s316 = smul.addr %s315, 8
        %s317 = scalar_lea.vmem [#allocation3], %s316
        %p318 = scmp.lt.s32.totalorder %s24, 1
        %s319 = scalar_select %p318, %s24, 1
        %p320 = scmp.lt.s32.totalorder %s25, 0
        %s321 = scalar_select %p320, %s25, 0
        %s322 = smul.addr %s319, 4
        %s323 = sadd.s32 %s321, %s322
        %s324 = smul.addr %s323, 4
        %s325 = scalar_lea.vmem %s0, %s324
        %p326 = scmp.lt.s32.totalorder %s24, 1
        %s327 = scalar_select %p326, %s24, 1
        %s328 = smul.addr %s327, 4
        %s329 = smul.addr %s328, 4
        %s330 = scalar_lea.vmem %s1, %s329
        %p331 = scmp.lt.s32.totalorder %s24, 1
        %s332 = scalar_select %p331, %s24, 1
        %s333 = smul.addr %s332, 4
        %s334 = smul.addr %s333, 4
        %s335 = scalar_lea.vmem %s2, %s334
        %p336 = scmp.lt.s32.totalorder %s24, 1
        %s337 = scalar_select %p336, %s24, 1
        %p338 = scmp.lt.s32.totalorder %s25, 0
        %s339 = scalar_select %p338, %s25, 0
        %s340 = sadd.s32 %s339, %s337
        %s341 = smul.addr %s340, 8
        %s342 = scalar_lea.vmem %s3, %s341
        %v344 = vld [vmem:[%s325] sm:$0xf]
        %v345 = vld [vmem:[%s325 + $0x4] sm:$0xf]
        %v346 = vld [vmem:[%s325 + $0x8] sm:$0xf]
        %v347 = vld [vmem:[%s325 + $0xc] sm:$0xf]
        %v348 = vld [vmem:[%s330] sm:$0xf]
        %v349 = vld [vmem:[%s330 + $0x4] sm:$0xf]
        %v350 = vld [vmem:[%s330 + $0x8] sm:$0xf]
        %v351 = vld [vmem:[%s330 + $0xc] sm:$0xf]
        %v352 = vld [vmem:[%s335] sm:$0xf]
        %v353 = vld [vmem:[%s335 + $0x4] sm:$0xf]
        %v354 = vld [vmem:[%s335 + $0x8] sm:$0xf]
        %v355 = vld [vmem:[%s335 + $0xc] sm:$0xf]
        %vm356 = vcmask 64512
        %v358 = vsel %vm356, %v344, 0
        %v361 = vsel %vm356, %v348, 0
        %363 = vmatpush.bf16.xpose.msra.mxu0 0
        %364 = vmatpush.bf16.xpose.msra.mxu0 0
        %365 = vmatpush.bf16.xpose.msra.mxu0 0
        %366 = vmatpush.bf16.xpose.msra.mxu0 0
        %367 = vmatpush.bf16.xpose.msra.mxu0 0
        %368 = vmatpush.bf16.xpose.msra.mxu0 0
        %369 = vmatpush.bf16.xpose.msra.mxu0 0
        %370 = vmatpush.bf16.xpose.msra.mxu0 %v361
        %371 = vmatmul.bf16.gmra.mxu0 %v358
        %v372 = vpop.f32.mrf.mxu0
        %v373 = vadd.f32 0.0, %v372
        %v374 = vpop.f32.mrf.mxu0
        %375 = vdwg.mxu0
        %v377 = vsel %vm356, %v345, 0
        %v380 = vsel %vm356, %v349, 0
        %382 = vmatpush.bf16.xpose.msra.mxu0 0
        %383 = vmatpush.bf16.xpose.msra.mxu0 0
        %384 = vmatpush.bf16.xpose.msra.mxu0 0
        %385 = vmatpush.bf16.xpose.msra.mxu0 0
        %386 = vmatpush.bf16.xpose.msra.mxu0 0
        %387 = vmatpush.bf16.xpose.msra.mxu0 0
        %388 = vmatpush.bf16.xpose.msra.mxu0 0
        %389 = vmatpush.bf16.xpose.msra.mxu0 %v380
        %390 = vmatmul.bf16.gmra.mxu0 %v377
        %v391 = vpop.f32.mrf.mxu0
        %v392 = vadd.f32 0.0, %v391
        %v393 = vpop.f32.mrf.mxu0
        %394 = vdwg.mxu0
        %v396 = vsel %vm356, %v346, 0
        %v399 = vsel %vm356, %v350, 0
        %401 = vmatpush.bf16.xpose.msra.mxu0 0
        %402 = vmatpush.bf16.xpose.msra.mxu0 0
        %403 = vmatpush.bf16.xpose.msra.mxu0 0
        %404 = vmatpush.bf16.xpose.msra.mxu0 0
        %405 = vmatpush.bf16.xpose.msra.mxu0 0
        %406 = vmatpush.bf16.xpose.msra.mxu0 0
        %407 = vmatpush.bf16.xpose.msra.mxu0 0
        %408 = vmatpush.bf16.xpose.msra.mxu0 %v399
        %409 = vmatmul.bf16.gmra.mxu0 %v396
        %v410 = vpop.f32.mrf.mxu0
        %v411 = vadd.f32 0.0, %v410
        %v412 = vpop.f32.mrf.mxu0
        %413 = vdwg.mxu0
        %v415 = vsel %vm356, %v347, 0
        %v418 = vsel %vm356, %v351, 0
        %420 = vmatpush.bf16.xpose.msra.mxu0 0
        %421 = vmatpush.bf16.xpose.msra.mxu0 0
        %422 = vmatpush.bf16.xpose.msra.mxu0 0
        %423 = vmatpush.bf16.xpose.msra.mxu0 0
        %424 = vmatpush.bf16.xpose.msra.mxu0 0
        %425 = vmatpush.bf16.xpose.msra.mxu0 0
        %426 = vmatpush.bf16.xpose.msra.mxu0 0
        %427 = vmatpush.bf16.xpose.msra.mxu0 %v418
        %428 = vmatmul.bf16.gmra.mxu0 %v415
        %v429 = vpop.f32.mrf.mxu0
        %v430 = vadd.f32 0.0, %v429
        %v431 = vpop.f32.mrf.mxu0
        %432 = vdwg.mxu0
        %v433 = vsel %vm356, %v373, -inf
        %434 = vmax.xlane.f32.xlu0 %v433
        %v435 = vpop.xlane.xlu0 %434
        %v436 = vsel %vm356, %v392, -inf
        %437 = vmax.xlane.f32.xlu0 %v436
        %v438 = vpop.xlane.xlu0 %437
        %v439 = vsel %vm356, %v411, -inf
        %440 = vmax.xlane.f32.xlu0 %v439
        %v441 = vpop.xlane.xlu0 %440
        %v442 = vsel %vm356, %v430, -inf
        %443 = vmax.xlane.f32.xlu0 %v442
        %v444 = vpop.xlane.xlu0 %443
        %v445 = vsub.f32 %v373, %v435
        %v446 = vsub.f32 %v392, %v438
        %v447 = vsub.f32 %v411, %v441
        %v448 = vsub.f32 %v430, %v444
        %v449 = vmul.f32 %v445, 1.442695
        %v450 = vpow.pop %v449
        %v451 = vmul.f32 %v446, 1.442695
        %v452 = vpow.pop %v451
        %v453 = vmul.f32 %v447, 1.442695
        %v454 = vpow.pop %v453
        %v455 = vmul.f32 %v448, 1.442695
        %v456 = vpow.pop %v455
        %v457 = vsel %vm356, %v450, 0.0
        %458 = vadd.xlane.f32.xlu0 %v457
        %v459 = vpop.xlane.xlu0 %458
        %v460 = vsel %vm356, %v452, 0.0
        %461 = vadd.xlane.f32.xlu0 %v460
        %v462 = vpop.xlane.xlu0 %461
        %v463 = vsel %vm356, %v454, 0.0
        %464 = vadd.xlane.f32.xlu0 %v463
        %v465 = vpop.xlane.xlu0 %464
        %v466 = vsel %vm356, %v456, 0.0
        %467 = vadd.xlane.f32.xlu0 %v466
        %v468 = vpop.xlane.xlu0 %467
        %v469 = vpack.c.bf16 %v450, %v450
        %v470 = vpack.c.bf16 %v452, %v452
        %v471 = vpack.c.bf16 %v454, %v454
        %v472 = vpack.c.bf16 %v456, %v456
        %v474 = vsel %vm356, %v469, 0
        %vm476 = vcmask 1043456
        %v478 = vsel %vm476, %v352, 0
        %480 = vmatpush.bf16.msra.mxu0 0
        %481 = vmatpush.bf16.msra.mxu0 0
        %482 = vmatpush.bf16.msra.mxu0 0
        %483 = vmatpush.bf16.msra.mxu0 0
        %484 = vmatpush.bf16.msra.mxu0 0
        %485 = vmatpush.bf16.msra.mxu0 0
        %486 = vmatpush.bf16.msra.mxu0 0
        %487 = vmatpush.bf16.msra.mxu0 %v478
        %488 = vmatmul.bf16.gmra.mxu0 %v474
        %v489 = vpop.f32.mrf.mxu0
        %v490 = vadd.f32 0.0, %v489
        %v491 = vpop.f32.mrf.mxu0
        %492 = vdwg.mxu0
        %v494 = vsel %vm356, %v470, 0
        %v497 = vsel %vm476, %v353, 0
        %499 = vmatpush.bf16.msra.mxu0 0
        %500 = vmatpush.bf16.msra.mxu0 0
        %501 = vmatpush.bf16.msra.mxu0 0
        %502 = vmatpush.bf16.msra.mxu0 0
        %503 = vmatpush.bf16.msra.mxu0 0
        %504 = vmatpush.bf16.msra.mxu0 0
        %505 = vmatpush.bf16.msra.mxu0 0
        %506 = vmatpush.bf16.msra.mxu0 %v497
        %507 = vmatmul.bf16.gmra.mxu0 %v494
        %v508 = vpop.f32.mrf.mxu0
        %v509 = vadd.f32 0.0, %v508
        %v510 = vpop.f32.mrf.mxu0
        %511 = vdwg.mxu0
        %v513 = vsel %vm356, %v471, 0
        %v516 = vsel %vm476, %v354, 0
        %518 = vmatpush.bf16.msra.mxu0 0
        %519 = vmatpush.bf16.msra.mxu0 0
        %520 = vmatpush.bf16.msra.mxu0 0
        %521 = vmatpush.bf16.msra.mxu0 0
        %522 = vmatpush.bf16.msra.mxu0 0
        %523 = vmatpush.bf16.msra.mxu0 0
        %524 = vmatpush.bf16.msra.mxu0 0
        %525 = vmatpush.bf16.msra.mxu0 %v516
        %526 = vmatmul.bf16.gmra.mxu0 %v513
        %v527 = vpop.f32.mrf.mxu0
        %v528 = vadd.f32 0.0, %v527
        %v529 = vpop.f32.mrf.mxu0
        %530 = vdwg.mxu0
        %v532 = vsel %vm356, %v472, 0
        %v535 = vsel %vm476, %v355, 0
        %537 = vmatpush.bf16.msra.mxu0 0
        %538 = vmatpush.bf16.msra.mxu0 0
        %539 = vmatpush.bf16.msra.mxu0 0
        %540 = vmatpush.bf16.msra.mxu0 0
        %541 = vmatpush.bf16.msra.mxu0 0
        %542 = vmatpush.bf16.msra.mxu0 0
        %543 = vmatpush.bf16.msra.mxu0 0
        %544 = vmatpush.bf16.msra.mxu0 %v535
        %545 = vmatmul.bf16.gmra.mxu0 %v532
        %v546 = vpop.f32.mrf.mxu0
        %v547 = vadd.f32 0.0, %v546
        %v548 = vpop.f32.mrf.mxu0
        %549 = vdwg.mxu0
        %v550 = vrcp.pop %v459
        %v551 = vrcp.pop %v462
        %v552 = vrcp.pop %v465
        %v553 = vrcp.pop %v468
        %v554 = vmul.f32 %v490, %v550
        %v555 = vmul.f32 %v509, %v551
        %v556 = vmul.f32 %v528, %v552
        %v557 = vmul.f32 %v547, %v553
        %558 = vst.msk [vmem:[#allocation2] sm:$0xff] %vm356, %v554
        %560 = vrot.lane.b32.xlu0 %v555, 8
        %v561 = vpop.permute.xlu0 %560
        %vm563 = vcmask 130112
        %564 = vst.msk [vmem:[#allocation2] sm:$0xff] %vm563, %v561
        %566 = vrot.lane.b32.xlu0 %v556, 16
        %v567 = vpop.permute.xlu0 %566
        %vm569 = vcmask 195712
        %570 = vst.msk [vmem:[#allocation2] sm:$0xff] %vm569, %v567
        %572 = vrot.lane.b32.xlu0 %v557, 24
        %v573 = vpop.permute.xlu0 %572
        %vm575 = vcmask 261312
        %576 = vst.msk [vmem:[#allocation2] sm:$0xff] %vm575, %v573
        %v577 = vld [vmem:[#allocation2] sm:$0xff]
        %v578 = vpack.c.bf16 %v577, %v577
        %v579 = vld [vmem:[%s4] sm:$0xf]
        %v580 = vld [vmem:[%s4 + $0x4] sm:$0xf]
        %v581 = vld [vmem:[%s4 + $0x8] sm:$0xf]
        %v582 = vld [vmem:[%s4 + $0xc] sm:$0xf]
        %v587 = vunpack.c.l.b16 %v579
        %v588 = vunpack.c.l.b16 %v580
        %v589 = vunpack.c.l.b16 %v581
        %v590 = vunpack.c.l.b16 %v582
        %v591 = vpack.c.b16 %v588, %v587
        %v592 = vpack.c.b16 %v590, %v589
        %vm595 = vcmask 261120
        %v597 = vsel %vm595, %v578, 0
        %599 = vmatpush.bf16.msra.mxu0 0
        %600 = vmatpush.bf16.msra.mxu0 0
        %601 = vmatpush.bf16.msra.mxu0 0
        %602 = vmatpush.bf16.msra.mxu0 0
        %603 = vmatpush.bf16.msra.mxu0 0
        %604 = vmatpush.bf16.msra.mxu0 0
        %605 = vmatpush.bf16.msra.mxu0 %v592
        %606 = vmatpush.bf16.msra.mxu0 %v591
        %607 = vmatmul.bf16.gmra.mxu0 %v597
        %v608 = vpop.f32.mrf.mxu0
        %v609 = vadd.f32 0.0, %v608
        %v610 = vpop.f32.mrf.mxu0
        %611 = vdwg.mxu0
        %v612 = vld [vmem:[%s342] sm:$0xff]
        %v613 = vadd.f32 %v612, %v609
        %v614 = vld [vmem:[%s5] sm:$0x1]
        %v615 = vperm.slane %v614, 0
        %v616 = vadd.f32 %v613, %v615
        %v617 = vsel %vm595, %v616, 0.0
        %618 = vadd.xlane.f32.xlu0 %v617
        %v619 = vpop.xlane.xlu0 %618
        %v620 = vrcp.pop 32.0
        %v621 = vmul.f32 32.0, %v620
        %v622 = vsub.f32 1.0, %v621
        %v623 = vmul.f32 %v620, %v622
        %v624 = vadd.f32 %v620, %v623
        %vm625 = vweird.f32 %v620
        %v626 = vsel %vm625, %v620, %v624
        %v627 = vmul.f32 %v619, %v626
        %v628 = vsub.f32 %v616, %v627
        %v629 = vmul.f32 %v628, %v628
        %v630 = vsel %vm595, %v629, 0.0
        %631 = vadd.xlane.f32.xlu0 %v630
        %v632 = vpop.xlane.xlu0 %631
        %v633 = vmul.f32 %v632, %v626
        %v634 = vadd.f32 %v633, 1e-05
        %v635 = vrsqrt.pop %v634
        %v636 = vmul.f32 %v635, %v634
        %v637 = vmul.f32 %v636, %v635
        %v638 = vmul.f32 0.5, %v637
        %v639 = vsub.f32 1.5, %v638
        %v640 = vmul.f32 %v635, %v639
        %vm641 = vweird.f32 %v634
        %vm642 = vweird.f32 %v635
        %vm643 = vmor %vm641, %vm642
        %v644 = vsel %vm643, %v635, %v640
        %v645 = vmul.f32 %v628, %v644
        %v646 = vld [vmem:[%s5 + $0x1] sm:$0x1]
        %v647 = vperm.slane %v646, 0
        %v648 = vmul.f32 %v645, %v647
        %v649 = vld [vmem:[%s5 + $0x2] sm:$0x1]
        %v650 = vperm.slane %v649, 0
        %v651 = vadd.f32 %v648, %v650
        %652 = vst.msk [vmem:[%s317] sm:$0xff] %vm595, %v651
        %s653 = sand.u32 %s192, 1
        %s654 = scalar_lea.sflag [#allocation4], %s653
        %s655 = sand.u32 %s192, 1
        %s656 = smul.addr %s655, 8
        %s657 = scalar_lea.vmem [#allocation3], %s656
        // Predicated region
        $region45: #{mhsa_layer.3} parent=43 // pred_check
          %p658 = pneg %p202
        $region46: #{mhsa_layer.3} parent=43 // pred_check_branch
          %660 = sbr.rel (%p658) target = $region48
        $region47: #{mhsa_layer.3} parent=43 // pred_region
          %662 = vsyncadd %s654, 0
          %s663 = sadd.s32 %s25, %s24
          %s664 = smul.addr %s663, 8
          %s665 = scalar_lea.hbm %s6, %s664
          %s667 = sshll.u32 %s657, 4
          %s668 = int_to_ptr.vmem [resolvable:$true] %s667
          %s669 = sshll.u32 %s665, 4
          %s670 = int_to_ptr.hbm [resolvable:$true] %s669
          %672 = dma.vmem_to_hbm [thread:$0]  %s668, 128, %s670, %s654
        $region48: #{mhsa_layer.3} parent=43 // pred_fallthru
          _
      $region44: #{mhsa_layer.3} parent=5 // pred_fallthru
        _
      %p673 = scmp.le.s32.totalorder 2, %s15
      // Predicated region
      $region49: #{mhsa_layer.3} parent=5 // pred_check
        %p674 = pneg %p673
      $region50: #{mhsa_layer.3} parent=5 // pred_check_branch
        %676 = sbr.rel (%p674) target = $region52
      $region51: #{mhsa_layer.3} parent=5 // pred_region
        %s677 = ssub.s32 %s15, 2
        // Predicated region
        $region53: #{mhsa_layer.3} parent=51 // pred_check
          %p678 = pneg %p208
        $region54: #{mhsa_layer.3} parent=51 // pred_check_branch
          %680 = sbr.rel (%p678) target = $region56
        $region55: #{mhsa_layer.3} parent=51 // pred_region
          %s681 = sand.u32 %s193, 1
          %s682 = scalar_lea.sflag [#allocation4], %s681
          %s683 = sand.u32 %s193, 1
          %s684 = smul.addr %s683, 8
          %s685 = scalar_lea.vmem [#allocation3], %s684
          %687 = dma.done %s682, 128
        $region56: #{mhsa_layer.3} parent=51 // pred_fallthru
          _
      $region52: #{mhsa_layer.3} parent=5 // pred_fallthru
        _
    $region6: #{mhsa_layer.3} parent=1 // loop_footer
      %s19 = sadd.s32 1, %s15
    $region7: #{mhsa_layer.3} parent=1 // loop_footer_branch
      %14 = sbr.rel target = $region3
    $region8: #{mhsa_layer.3} parent=1 // loop_exit
      _
    %688 = vsyncpa [#allocation4], 1
    %s689 = scalar_lea.sflag [#allocation4], 1
    %690 = vsyncpa %s689, 1

</llo_original>
